<compile_context>
chip_gen: v7x
topology: tpu7x:2x2x1
jax: 0.10.0
libtpu: 0.0.40
codegen_flags: <defaults>
</compile_context>

<pallas_src>
import functools

import jax
import jax.numpy as jnp
from jax.experimental import pallas as pl
from jax.experimental.pallas import tpu as pltpu


OUT_LANES = 128  # lane-dense output width (true output dim is 3)


def ekstraklasa_kernel(cat_ref, num_ref, table1_ref, w1num_ref, w2b_ref, w3b_ref,
                       out_ref, *, num_teams, h1_dim, h2_dim):
    T = num_teams
    cat = cat_ref[...]                          # (B, 2) int32
    B = cat.shape[0]
    K = table1_ref.shape[0]                     # padded(2T + 1) rows

    home = cat[:, 0:1]                          # (B, 1) -> columns [0, T)
    away = cat[:, 1:2] + T                      # (B, 1) -> columns [T, 2T)
    bias_col = 2 * T                            # constant-1 column -> adds b1

    # Combined one-hot: ones at home id, T+away id and the bias column.
    # (Out-of-range team ids silently contribute zero, like the old version.)
    lane = jax.lax.broadcasted_iota(jnp.int32, (B, K), 1)
    onehot = ((lane == home) | (lane == away) | (lane == bias_col)).astype(jnp.float32)

    # Layer 1: embedding gather + Linear(2E+3 -> 64) + b1, fused into one MXU
    # push (gathered/bias part) plus one tiny push for the numeric features.
    h1 = jnp.dot(onehot, table1_ref[...], preferred_element_type=jnp.float32)
    h1 = h1 + jnp.dot(num_ref[...], w1num_ref[...], preferred_element_type=jnp.float32)
    h1 = jnp.maximum(h1, 0.0)

    # Layer 2: Linear(64 -> 16) + ReLU.  Weights and bias packed in one operand;
    # static sublane-aligned slices (64 is a multiple of 8).
    w2 = w2b_ref[0:h1_dim, :]
    b2 = w2b_ref[h1_dim:h1_dim + 1, :]
    h2 = jnp.maximum(jnp.dot(h1, w2, preferred_element_type=jnp.float32) + b2, 0.0)

    # Layer 3: Linear(16 -> 3), zero-padded to 128 lanes for an unmasked store.
    w3 = w3b_ref[0:h2_dim, :]
    b3 = w3b_ref[h2_dim:h2_dim + 1, :]
    out = jnp.dot(h2, w3, preferred_element_type=jnp.float32) + b3

    out_ref[...] = out.astype(out_ref.dtype)


def prepare_params(params):
    """One-time, parameter-only folding/packing (exact re-association)."""
    home_emb, away_emb = params["home_emb"], params["away_emb"]
    T, E = home_emb.shape
    w1, b1 = params["w1"], params["b1"]                     # (2E+3, 64), (1, 64)

    # Fold embeddings + b1 into a single gather table (2T+1, 64), padded to x8 rows.
    home_tab = home_emb @ w1[0:E]                           # (T, 64)
    away_tab = away_emb @ w1[E:2 * E]                       # (T, 64)
    table1 = jnp.concatenate([home_tab, away_tab, b1], axis=0)
    pad_rows = (-table1.shape[0]) % 8
    table1 = jnp.pad(table1, ((0, pad_rows), (0, 0)))
    w1num = w1[2 * E:]                                      # (3, 64)

    # Pack (w2, b2) and (w3, b3); pad layer 3 to lane-dense 128 output columns.
    w2b = jnp.concatenate([params["w2"], params["b2"]], axis=0)          # (65, 16)
    out_dim = params["w3"].shape[1]
    w3p = jnp.pad(params["w3"], ((0, 0), (0, OUT_LANES - out_dim)))
    b3p = jnp.pad(params["b3"], ((0, 0), (0, OUT_LANES - out_dim)))
    w3b = jnp.concatenate([w3p, b3p], axis=0)                            # (17, 128)

    return {"num_teams": T, "out_dim": out_dim,
            "h1_dim": params["w2"].shape[0], "h2_dim": params["w3"].shape[0],
            "table1": table1, "w1num": w1num, "w2b": w2b, "w3b": w3b}


def ekstraklasa_mlp(cat_inputs, num_inputs, prepped):
    B = cat_inputs.shape[0]
    vmem = pl.BlockSpec(memory_space=pltpu.MemorySpace.VMEM)
    kernel = functools.partial(
        ekstraklasa_kernel,
        num_teams=prepped["num_teams"],
        h1_dim=prepped["h1_dim"],
        h2_dim=prepped["h2_dim"],
    )
    out = pl.pallas_call(
        kernel,
        out_shape=jax.ShapeDtypeStruct((B, OUT_LANES), jnp.float32),
        in_specs=[vmem] * 6,
        out_specs=vmem,
    )(cat_inputs, num_inputs,
      prepped["table1"], prepped["w1num"], prepped["w2b"], prepped["w3b"])
    return out[:, :prepped["out_dim"]]


def init_params(key, num_unique_team, embedding_vector_size):
    """Deterministic synthetic parameters (shapes match the PyTorch module)."""
    E = embedding_vector_size
    input_size = 2 * E + 3
    ks = jax.random.split(key, 8)

    def linear(kw, kb, fan_in, fan_out):
        lim = 1.0 / jnp.sqrt(fan_in)
        w = jax.random.uniform(kw, (fan_in, fan_out), jnp.float32, -lim, lim)
        b = jax.random.uniform(kb, (1, fan_out), jnp.float32, -lim, lim)
        return w, b

    home_emb = jax.random.normal(ks[0], (num_unique_team, E), jnp.float32)
    away_emb = jax.random.normal(ks[1], (num_unique_team, E), jnp.float32)
    w1, b1 = linear(ks[2], ks[3], input_size, 64)
    w2, b2 = linear(ks[4], ks[5], 64, 16)
    w3, b3 = linear(ks[6], ks[7], 16, 3)
    return {"home_emb": home_emb, "away_emb": away_emb,
            "w1": w1, "b1": b1, "w2": w2, "b2": b2, "w3": w3, "b3": b3}


def reference_forward(cat_inputs, num_inputs, params):
    """Pure-JAX reference matching the PyTorch forward (concat + 3 Linears)."""
    home = params["home_emb"][cat_inputs[:, 0]]
    away = params["away_emb"][cat_inputs[:, 1]]
    x = jnp.concatenate([home, away, num_inputs], axis=1)
    h1 = jnp.maximum(x @ params["w1"] + params["b1"], 0.0)
    h2 = jnp.maximum(h1 @ params["w2"] + params["b2"], 0.0)
    return h2 @ params["w3"] + params["b3"]


if __name__ == "__main__":
    num_unique_team = 18
    embedding_vector_size = 8
    batch = 8

    key = jax.random.PRNGKey(0)
    k_params, k_cat, k_num = jax.random.split(key, 3)

    params = init_params(k_params, num_unique_team, embedding_vector_size)
    cat_inputs = jax.random.randint(k_cat, (batch, 2), 0, num_unique_team, jnp.int32)
    num_inputs = jax.random.normal(k_num, (batch, 3), jnp.float32)

    prepped = jax.tree_util.tree_map(
        lambda x: x, prepare_params(params))  # one-time parameter packing

    out = ekstraklasa_mlp(cat_inputs, num_inputs, prepped)
    out = jax.block_until_ready(out)

    ref = reference_forward(cat_inputs, num_inputs, params)
    assert out.shape == (batch, 3)
    assert jnp.allclose(out, ref, atol=1e-4, rtol=1e-4), "mismatch vs reference"

    print("KERNEL_OK")
</pallas_src>

<mosaic_0001>
module attributes {stable_mosaic.version = 11 : i64} {
  func.func @ekstraklasa_kernel(%arg0: memref<8x2xi32, #tpu.memory_space<vmem>>, %arg1: memref<8x3xf32, #tpu.memory_space<vmem>>, %arg2: memref<40x64xf32, #tpu.memory_space<vmem>>, %arg3: memref<3x64xf32, #tpu.memory_space<vmem>>, %arg4: memref<65x16xf32, #tpu.memory_space<vmem>>, %arg5: memref<17x128xf32, #tpu.memory_space<vmem>>, %arg6: memref<8x128xf32, #tpu.memory_space<vmem>>) attributes {dimension_semantics = [], scalar_prefetch = 0 : i64, scratch_operands = 0 : i64, tpu.core_type = #tpu.core_type<tc>} {
    %c0 = arith.constant 0 : index
    %c0_0 = arith.constant 0 : index
    %0 = vector.load %arg0[%c0, %c0_0] : memref<8x2xi32, #tpu.memory_space<vmem>>, vector<8x2xi32>
    %1 = vector.extract_strided_slice %0 {offsets = [0, 0], sizes = [8, 1], strides = [1, 1]} : vector<8x2xi32> to vector<8x1xi32>
    %2 = vector.extract_strided_slice %0 {offsets = [0, 1], sizes = [8, 1], strides = [1, 1]} : vector<8x2xi32> to vector<8x1xi32>
    %c18_i32 = arith.constant 18 : i32
    %3 = vector.broadcast %c18_i32 : i32 to vector<8x1xi32>
    %4 = arith.addi %2, %3 : vector<8x1xi32>
    %5 = tpu.iota {dimensions = array<i32: 1>} : vector<8x40xi32>
    %6 = vector.broadcast %1 : vector<8x1xi32> to vector<8x40xi32>
    %7 = arith.cmpi eq, %5, %6 : vector<8x40xi32>
    %8 = vector.broadcast %4 : vector<8x1xi32> to vector<8x40xi32>
    %9 = arith.cmpi eq, %5, %8 : vector<8x40xi32>
    %10 = arith.ori %7, %9 : vector<8x40xi1>
    %c36_i32 = arith.constant 36 : i32
    %11 = vector.broadcast %c36_i32 : i32 to vector<8x40xi32>
    %12 = arith.cmpi eq, %5, %11 : vector<8x40xi32>
    %13 = arith.ori %10, %12 : vector<8x40xi1>
    %14 = arith.extui %13 : vector<8x40xi1> to vector<8x40xi32>
    %15 = arith.sitofp %14 : vector<8x40xi32> to vector<8x40xf32>
    %c0_1 = arith.constant 0 : index
    %c0_2 = arith.constant 0 : index
    %16 = vector.load %arg2[%c0_1, %c0_2] : memref<40x64xf32, #tpu.memory_space<vmem>>, vector<40x64xf32>
    %cst = arith.constant dense<0.000000e+00> : vector<8x64xf32>
    %17 = tpu.matmul %15, %16, %cst {dimension_numbers = #tpu.dot_dimension_numbers<[1], [0], [0], [1], [0, 0, 1, 1], [], []>} : vector<8x40xf32>, vector<40x64xf32>, vector<8x64xf32> -> vector<8x64xf32>
    %c0_3 = arith.constant 0 : index
    %c0_4 = arith.constant 0 : index
    %18 = vector.load %arg1[%c0_3, %c0_4] : memref<8x3xf32, #tpu.memory_space<vmem>>, vector<8x3xf32>
    %c0_5 = arith.constant 0 : index
    %c0_6 = arith.constant 0 : index
    %19 = vector.load %arg3[%c0_5, %c0_6] : memref<3x64xf32, #tpu.memory_space<vmem>>, vector<3x64xf32>
    %cst_7 = arith.constant dense<0.000000e+00> : vector<8x64xf32>
    %20 = tpu.matmul %18, %19, %cst_7 {dimension_numbers = #tpu.dot_dimension_numbers<[1], [0], [0], [1], [0, 0, 1, 1], [], []>} : vector<8x3xf32>, vector<3x64xf32>, vector<8x64xf32> -> vector<8x64xf32>
    %21 = arith.addf %17, %20 : vector<8x64xf32>
    %cst_8 = arith.constant 0.000000e+00 : f32
    %22 = vector.broadcast %cst_8 : f32 to vector<8x64xf32>
    %23 = arith.maximumf %21, %22 : vector<8x64xf32>
    %c0_9 = arith.constant 0 : index
    %c0_10 = arith.constant 0 : index
    %24 = vector.load %arg4[%c0_9, %c0_10] : memref<65x16xf32, #tpu.memory_space<vmem>>, vector<64x16xf32>
    %c64 = arith.constant 64 : index
    %c0_11 = arith.constant 0 : index
    %25 = vector.load %arg4[%c64, %c0_11] : memref<65x16xf32, #tpu.memory_space<vmem>>, vector<1x16xf32>
    %cst_12 = arith.constant dense<0.000000e+00> : vector<8x16xf32>
    %26 = tpu.matmul %23, %24, %cst_12 {dimension_numbers = #tpu.dot_dimension_numbers<[1], [0], [0], [1], [0, 0, 1, 1], [], []>} : vector<8x64xf32>, vector<64x16xf32>, vector<8x16xf32> -> vector<8x16xf32>
    %27 = vector.broadcast %25 : vector<1x16xf32> to vector<8x16xf32>
    %28 = arith.addf %26, %27 : vector<8x16xf32>
    %cst_13 = arith.constant 0.000000e+00 : f32
    %29 = vector.broadcast %cst_13 : f32 to vector<8x16xf32>
    %30 = arith.maximumf %28, %29 : vector<8x16xf32>
    %c0_14 = arith.constant 0 : index
    %c0_15 = arith.constant 0 : index
    %31 = vector.load %arg5[%c0_14, %c0_15] : memref<17x128xf32, #tpu.memory_space<vmem>>, vector<16x128xf32>
    %c16 = arith.constant 16 : index
    %c0_16 = arith.constant 0 : index
    %32 = vector.load %arg5[%c16, %c0_16] : memref<17x128xf32, #tpu.memory_space<vmem>>, vector<1x128xf32>
    %cst_17 = arith.constant dense<0.000000e+00> : vector<8x128xf32>
    %33 = tpu.matmul %30, %31, %cst_17 {dimension_numbers = #tpu.dot_dimension_numbers<[1], [0], [0], [1], [0, 0, 1, 1], [], []>} : vector<8x16xf32>, vector<16x128xf32>, vector<8x128xf32> -> vector<8x128xf32>
    %34 = vector.broadcast %32 : vector<1x128xf32> to vector<8x128xf32>
    %35 = arith.addf %33, %34 : vector<8x128xf32>
    %c0_18 = arith.constant 0 : index
    %c0_19 = arith.constant 0 : index
    %36 = vector.load %arg6[%c0_18, %c0_19] : memref<8x128xf32, #tpu.memory_space<vmem>>, vector<8x128xf32>
    tpu.vector_store %arg6[%c0_18, %c0_19], %35 {strides = array<i32>} : memref<8x128xf32, #tpu.memory_space<vmem>>, vector<8x128xf32>,
    return
  }
}

</mosaic_0001>

<llo_original>
// kernel: tpu_custom_call.1
$region0: #{tpu_custom_call.1}
  #allocation0 [shape = 'u32[]', space=smem, size = 0x4, offset = 0x4, fixed_abs, tag = 'smem constant byte address 0x4 - core index']
  #allocation1 [shape = 'u32[144,128]{1,0:T(1,128)}', space=vmem, size = 0x12000, scoped, tag = 'internal scratch']
  %s0 = inlined_call_operand.vmem [shape: s32[8,2], index: 0, kind: input, shape index: {}]
  %s1 = inlined_call_operand.vmem [shape: f32[8,3], index: 1, kind: input, shape index: {}]
  %s2 = inlined_call_operand.vmem [shape: f32[40,64], index: 2, kind: input, shape index: {}]
  %s3 = inlined_call_operand.vmem [shape: f32[3,64], index: 3, kind: input, shape index: {}]
  %s4 = inlined_call_operand.vmem [shape: f32[65,16], index: 4, kind: input, shape index: {}]
  %s5 = inlined_call_operand.vmem [shape: f32[17,128], index: 5, kind: input, shape index: {}]
  %s6 = inlined_call_operand.hbm [shape: f32[8,128], index: 6, kind: output, shape index: {}]
  %s7 = sld [smem:[#allocation0]]
  $region34: #{tpu_custom_call.1} parent=0
    _
  %s9 = ssub.s32 1, %s7
  %s10 = scalar_select 0, %s9, %s7
  $region1: #{tpu_custom_call.1} parent=0
    #allocation2 [shape = 'u8[4096]{0}', space=vmem, size = 0x1000, scoped, tag = 'output window, operand 0, single buffered']
    #allocation3 [shape = 's32[1]{0}', space=sflag, size = 0x4, scoped, tag = 'scoped memory for tpu_custom_call.1']
    %11 = vsyncpa [#allocation3], 0
    // Predicated region
    $region2: #{tpu_custom_call.1} parent=1 // pred_check
      _
    $region3: #{tpu_custom_call.1} parent=1 // pred_check_branch
      %13 = sbr.rel (0) target = $region5
    $region4: #{tpu_custom_call.1} parent=1 // pred_region
      _
    $region5: #{tpu_custom_call.1} parent=1 // pred_fallthru
      _
    // Predicated region
    $region6: #{tpu_custom_call.1} parent=1 // pred_check
      _
    $region7: #{tpu_custom_call.1} parent=1 // pred_check_branch
      %15 = sbr.rel (0) target = $region9
    $region8: #{tpu_custom_call.1} parent=1 // pred_region
      _
    $region9: #{tpu_custom_call.1} parent=1 // pred_fallthru
      _
    // Predicated region
    $region10: #{tpu_custom_call.1} parent=1 // pred_check
      _
    $region11: #{tpu_custom_call.1} parent=1 // pred_check_branch
      %17 = sbr.rel (0) target = $region13
    $region12: #{tpu_custom_call.1} parent=1 // pred_region
      _
    $region13: #{tpu_custom_call.1} parent=1 // pred_fallthru
      _
    // Predicated region
    $region14: #{tpu_custom_call.1} parent=1 // pred_check
      _
    $region15: #{tpu_custom_call.1} parent=1 // pred_check_branch
      %19 = sbr.rel (0) target = $region17
    $region16: #{tpu_custom_call.1} parent=1 // pred_region
      _
    $region17: #{tpu_custom_call.1} parent=1 // pred_fallthru
      _
    // Predicated region
    $region18: #{tpu_custom_call.1} parent=1 // pred_check
      _
    $region19: #{tpu_custom_call.1} parent=1 // pred_check_branch
      %21 = sbr.rel (0) target = $region21
    $region20: #{tpu_custom_call.1} parent=1 // pred_region
      _
    $region21: #{tpu_custom_call.1} parent=1 // pred_fallthru
      _
    // Predicated region
    $region22: #{tpu_custom_call.1} parent=1 // pred_check
      _
    $region23: #{tpu_custom_call.1} parent=1 // pred_check_branch
      %23 = sbr.rel (0) target = $region25
    $region24: #{tpu_custom_call.1} parent=1 // pred_region
      _
    $region25: #{tpu_custom_call.1} parent=1 // pred_fallthru
      _
    %v24 = vld [vmem:[%s0] sm:$0xff]
    %v25 = vadd.s32 %v24, 18
    %v26 = vlaneseq
    %v27 = vand.u32 %v26, 127
    %28 = vset.pattern.permute.xlu0 0
    %29 = vperm.xlu0 %28, %v24
    %v30 = vpop.permute.xlu0 %29
    %vm31 = vcmp.eq.s32.totalorder %v27, %v30
    %32 = vset.pattern.permute.xlu0 1
    %33 = vperm.xlu0 %32, %v25
    %v34 = vpop.permute.xlu0 %33
    %vm35 = vcmp.eq.s32.totalorder %v27, %v34
    %vm36 = vmor %vm31, %vm35
    %vm37 = vcmp.eq.s32.totalorder %v27, 36
    %vm38 = vmor %vm36, %vm37
    %v39 = vsel %vm38, 1, 0
    %v40 = vcvt.s32.f32 %v39
    %v41 = vld [vmem:[%s2] sm:$0xff]
    %v42 = vld [vmem:[%s2 + $0x8] sm:$0xff]
    %v43 = vld [vmem:[%s2 + $0x10] sm:$0xff]
    %v44 = vld [vmem:[%s2 + $0x18] sm:$0xff]
    %v45 = vld [vmem:[%s2 + $0x20] sm:$0xff]
    %v46 = vld [vmem:[%s1] sm:$0xff]
    %v47 = vld [vmem:[%s3] sm:$0x7]
    %vm48 = vcmask 23552
    %v50 = vsel %vm48, %v46, 0
    %vm52 = vcmask 1042432
    %v54 = vsel %vm52, %v47, 0
    %56 = vmatprep.subr.mxu0 0.0
    %57 = vmatpush1.msra.mxu0 %v54
    %58 = vmatprep.subr.mxu0 0.0
    %59 = vmatpush1.msra.mxu0 0.0
    %60 = vmatprep.subr.mxu0 0.0
    %61 = vmatpush1.msra.mxu0 0.0
    %62 = vmatprep.subr.mxu0 0.0
    %63 = vmatpush1.msra.mxu0 0.0
    %64 = vmatprep.subr.mxu0 0.0
    %65 = vmatpush1.msra.mxu0 0.0
    %66 = vmatprep.subr.mxu0 0.0
    %67 = vmatpush1.msra.mxu0 0.0
    %68 = vmatprep.subr.mxu0 0.0
    %69 = vmatpush1.msra.mxu0 0.0
    %70 = vmatprep.subr.mxu0 0.0
    %71 = vmatpush1.msra.mxu0 0.0
    %72 = vmatprep.subr.mxu0 0.0
    %73 = vmatpush1.msra.mxu0 0.0
    %74 = vmatprep.subr.mxu0 0.0
    %75 = vmatpush1.msra.mxu0 0.0
    %76 = vmatprep.subr.mxu0 0.0
    %77 = vmatpush1.msra.mxu0 0.0
    %78 = vmatprep.subr.mxu0 0.0
    %79 = vmatpush1.msra.mxu0 0.0
    %80 = vmatprep.subr.mxu0 0.0
    %81 = vmatpush1.msra.mxu0 0.0
    %82 = vmatprep.subr.mxu0 0.0
    %83 = vmatpush1.msra.mxu0 0.0
    %84 = vmatprep.subr.mxu0 0.0
    %85 = vmatpush1.msra.mxu0 0.0
    %86 = vmatprep.subr.mxu0 0.0
    %87 = vmatpush1.msra.mxu0 0.0
    %88 = vmatprep.subr.mxu0 0.0
    %89 = vmatpush1.msra.mxu0 0.0
    %90 = vmatprep.subr.mxu0 0.0
    %91 = vmatpush1.msra.mxu0 0.0
    %92 = vmatprep.subr.mxu0 0.0
    %93 = vmatpush1.msra.mxu0 0.0
    %94 = vmatprep.subr.mxu0 0.0
    %95 = vmatpush1.msra.mxu0 0.0
    %96 = vmatprep.subr.mxu0 0.0
    %97 = vmatpush1.msra.mxu0 0.0
    %98 = vmatprep.subr.mxu0 0.0
    %99 = vmatpush1.msra.mxu0 0.0
    %100 = vmatprep.subr.mxu0 0.0
    %101 = vmatpush1.msra.mxu0 0.0
    %102 = vmatprep.subr.mxu0 0.0
    %103 = vmatpush1.msra.mxu0 0.0
    %104 = vmatprep.subr.mxu0 0.0
    %105 = vmatpush1.msra.mxu0 0.0
    %106 = vmatprep.subr.mxu0 0.0
    %107 = vmatpush1.msra.mxu0 0.0
    %108 = vmatprep.subr.mxu0 0.0
    %109 = vmatpush1.msra.mxu0 0.0
    %110 = vmatprep.subr.mxu0 0.0
    %111 = vmatpush1.msra.mxu0 0.0
    %112 = vmatprep.subr.mxu0 0.0
    %113 = vmatpush1.msra.mxu0 0.0
    %114 = vmatprep.subr.mxu0 0.0
    %115 = vmatpush1.msra.mxu0 0.0
    %116 = vmatprep.subr.mxu0 0.0
    %117 = vmatpush1.msra.mxu0 0.0
    %118 = vmatprep.subr.mxu0 0.0
    %119 = vmatpush1.msra.mxu0 0.0
    %120 = vmatprep.mubr.f32.mxu0 0.0
    %121 = vmatmul.mubr.f32.gmra.mrb[0].mxu0 %v50
    %v122 = vpop.f32.mrb[0].mxu0
    %v123 = vadd.f32 0.0, %v122
    %v124 = vpop.f32.mrb[0].mxu0
    %125 = vdwg.mxu0
    %vm126 = vcmask 326656
    %v128 = vsel %vm126, %v40, 0
    %130 = vmatprep.subr.mxu0 0.0
    %131 = vmatpush1.msra.mxu0 %v41
    %132 = vmatprep.subr.mxu0 0.0
    %133 = vmatpush1.msra.mxu0 %v42
    %134 = vmatprep.subr.mxu0 0.0
    %135 = vmatpush1.msra.mxu0 %v43
    %136 = vmatprep.subr.mxu0 0.0
    %137 = vmatpush1.msra.mxu0 %v44
    %138 = vmatprep.subr.mxu0 0.0
    %139 = vmatpush1.msra.mxu0 %v45
    %140 = vmatprep.subr.mxu0 0.0
    %141 = vmatpush1.msra.mxu0 0.0
    %142 = vmatprep.subr.mxu0 0.0
    %143 = vmatpush1.msra.mxu0 0.0
    %144 = vmatprep.subr.mxu0 0.0
    %145 = vmatpush1.msra.mxu0 0.0
    %146 = vmatprep.subr.mxu0 0.0
    %147 = vmatpush1.msra.mxu0 0.0
    %148 = vmatprep.subr.mxu0 0.0
    %149 = vmatpush1.msra.mxu0 0.0
    %150 = vmatprep.subr.mxu0 0.0
    %151 = vmatpush1.msra.mxu0 0.0
    %152 = vmatprep.subr.mxu0 0.0
    %153 = vmatpush1.msra.mxu0 0.0
    %154 = vmatprep.subr.mxu0 0.0
    %155 = vmatpush1.msra.mxu0 0.0
    %156 = vmatprep.subr.mxu0 0.0
    %157 = vmatpush1.msra.mxu0 0.0
    %158 = vmatprep.subr.mxu0 0.0
    %159 = vmatpush1.msra.mxu0 0.0
    %160 = vmatprep.subr.mxu0 0.0
    %161 = vmatpush1.msra.mxu0 0.0
    %162 = vmatprep.subr.mxu0 0.0
    %163 = vmatpush1.msra.mxu0 0.0
    %164 = vmatprep.subr.mxu0 0.0
    %165 = vmatpush1.msra.mxu0 0.0
    %166 = vmatprep.subr.mxu0 0.0
    %167 = vmatpush1.msra.mxu0 0.0
    %168 = vmatprep.subr.mxu0 0.0
    %169 = vmatpush1.msra.mxu0 0.0
    %170 = vmatprep.subr.mxu0 0.0
    %171 = vmatpush1.msra.mxu0 0.0
    %172 = vmatprep.subr.mxu0 0.0
    %173 = vmatpush1.msra.mxu0 0.0
    %174 = vmatprep.subr.mxu0 0.0
    %175 = vmatpush1.msra.mxu0 0.0
    %176 = vmatprep.subr.mxu0 0.0
    %177 = vmatpush1.msra.mxu0 0.0
    %178 = vmatprep.subr.mxu0 0.0
    %179 = vmatpush1.msra.mxu0 0.0
    %180 = vmatprep.subr.mxu0 0.0
    %181 = vmatpush1.msra.mxu0 0.0
    %182 = vmatprep.subr.mxu0 0.0
    %183 = vmatpush1.msra.mxu0 0.0
    %184 = vmatprep.subr.mxu0 0.0
    %185 = vmatpush1.msra.mxu0 0.0
    %186 = vmatprep.subr.mxu0 0.0
    %187 = vmatpush1.msra.mxu0 0.0
    %188 = vmatprep.subr.mxu0 0.0
    %189 = vmatpush1.msra.mxu0 0.0
    %190 = vmatprep.subr.mxu0 0.0
    %191 = vmatpush1.msra.mxu0 0.0
    %192 = vmatprep.subr.mxu0 0.0
    %193 = vmatpush1.msra.mxu0 0.0
    %194 = vmatprep.mubr.f32.mxu0 0.0
    %195 = vmatmul.mubr.f32.gmra.mrb[0].mxu0 %v128
    %v196 = vpop.f32.mrb[0].mxu0
    %v197 = vadd.f32 %v123, %v196
    %v198 = vpop.f32.mrb[0].mxu0
    %199 = vdwg.mxu0
    %v200 = vmax.f32 %v197, 0.0
    %v201 = vld [vmem:[%s4] sm:$0xff]
    %v202 = vld [vmem:[%s4 + $0x8] sm:$0xff]
    %v203 = vld [vmem:[%s4 + $0x10] sm:$0xff]
    %v204 = vld [vmem:[%s4 + $0x18] sm:$0xff]
    %v205 = vld [vmem:[%s4 + $0x20] sm:$0xff]
    %v206 = vld [vmem:[%s4 + $0x28] sm:$0xff]
    %v207 = vld [vmem:[%s4 + $0x30] sm:$0xff]
    %v208 = vld [vmem:[%s4 + $0x38] sm:$0xff]
    %v209 = vld [vmem:[%s4 + $0x40] sm:$0x1]
    %v210 = vlaneseq
    %v211 = vshrl.u32 %v210, 7
    %v212 = vsub.s32 0, %v211
    %v213 = vrot.slane %v209, %v212
    %vm214 = vcmask 523264
    %v216 = vsel %vm214, %v200, 0
    %218 = vmatprep.subr.mxu0 0.0
    %219 = vmatpush1.msra.mxu0 %v201
    %220 = vmatprep.subr.mxu0 0.0
    %221 = vmatpush1.msra.mxu0 %v202
    %222 = vmatprep.subr.mxu0 0.0
    %223 = vmatpush1.msra.mxu0 %v203
    %224 = vmatprep.subr.mxu0 0.0
    %225 = vmatpush1.msra.mxu0 %v204
    %226 = vmatprep.subr.mxu0 0.0
    %227 = vmatpush1.msra.mxu0 %v205
    %228 = vmatprep.subr.mxu0 0.0
    %229 = vmatpush1.msra.mxu0 %v206
    %230 = vmatprep.subr.mxu0 0.0
    %231 = vmatpush1.msra.mxu0 %v207
    %232 = vmatprep.subr.mxu0 0.0
    %233 = vmatpush1.msra.mxu0 %v208
    %234 = vmatprep.subr.mxu0 0.0
    %235 = vmatpush1.msra.mxu0 0.0
    %236 = vmatprep.subr.mxu0 0.0
    %237 = vmatpush1.msra.mxu0 0.0
    %238 = vmatprep.subr.mxu0 0.0
    %239 = vmatpush1.msra.mxu0 0.0
    %240 = vmatprep.subr.mxu0 0.0
    %241 = vmatpush1.msra.mxu0 0.0
    %242 = vmatprep.subr.mxu0 0.0
    %243 = vmatpush1.msra.mxu0 0.0
    %244 = vmatprep.subr.mxu0 0.0
    %245 = vmatpush1.msra.mxu0 0.0
    %246 = vmatprep.subr.mxu0 0.0
    %247 = vmatpush1.msra.mxu0 0.0
    %248 = vmatprep.subr.mxu0 0.0
    %249 = vmatpush1.msra.mxu0 0.0
    %250 = vmatprep.subr.mxu0 0.0
    %251 = vmatpush1.msra.mxu0 0.0
    %252 = vmatprep.subr.mxu0 0.0
    %253 = vmatpush1.msra.mxu0 0.0
    %254 = vmatprep.subr.mxu0 0.0
    %255 = vmatpush1.msra.mxu0 0.0
    %256 = vmatprep.subr.mxu0 0.0
    %257 = vmatpush1.msra.mxu0 0.0
    %258 = vmatprep.subr.mxu0 0.0
    %259 = vmatpush1.msra.mxu0 0.0
    %260 = vmatprep.subr.mxu0 0.0
    %261 = vmatpush1.msra.mxu0 0.0
    %262 = vmatprep.subr.mxu0 0.0
    %263 = vmatpush1.msra.mxu0 0.0
    %264 = vmatprep.subr.mxu0 0.0
    %265 = vmatpush1.msra.mxu0 0.0
    %266 = vmatprep.subr.mxu0 0.0
    %267 = vmatpush1.msra.mxu0 0.0
    %268 = vmatprep.subr.mxu0 0.0
    %269 = vmatpush1.msra.mxu0 0.0
    %270 = vmatprep.subr.mxu0 0.0
    %271 = vmatpush1.msra.mxu0 0.0
    %272 = vmatprep.subr.mxu0 0.0
    %273 = vmatpush1.msra.mxu0 0.0
    %274 = vmatprep.subr.mxu0 0.0
    %275 = vmatpush1.msra.mxu0 0.0
    %276 = vmatprep.subr.mxu0 0.0
    %277 = vmatpush1.msra.mxu0 0.0
    %278 = vmatprep.subr.mxu0 0.0
    %279 = vmatpush1.msra.mxu0 0.0
    %280 = vmatprep.subr.mxu0 0.0
    %281 = vmatpush1.msra.mxu0 0.0
    %282 = vmatprep.mubr.f32.mxu0 0.0
    %283 = vmatmul.mubr.f32.gmra.mrb[0].mxu0 %v216
    %v284 = vpop.f32.mrb[0].mxu0
    %v285 = vadd.f32 %v213, %v284
    %v286 = vpop.f32.mrb[0].mxu0
    %287 = vdwg.mxu0
    %v288 = vmax.f32 %v285, 0.0
    %v289 = vld [vmem:[%s5] sm:$0xff]
    %v290 = vld [vmem:[%s5 + $0x8] sm:$0xff]
    %v291 = vld [vmem:[%s5 + $0x10] sm:$0x1]
    %v292 = vlaneseq
    %v293 = vshrl.u32 %v292, 7
    %v294 = vsub.s32 0, %v293
    %v295 = vrot.slane %v291, %v294
    %vm296 = vcmask 130048
    %v298 = vsel %vm296, %v288, 0
    %300 = vmatprep.subr.mxu0 0.0
    %301 = vmatpush1.msra.mxu0 %v289
    %302 = vmatprep.subr.mxu0 0.0
    %303 = vmatpush1.msra.mxu0 %v290
    %304 = vmatprep.subr.mxu0 0.0
    %305 = vmatpush1.msra.mxu0 0.0
    %306 = vmatprep.subr.mxu0 0.0
    %307 = vmatpush1.msra.mxu0 0.0
    %308 = vmatprep.subr.mxu0 0.0
    %309 = vmatpush1.msra.mxu0 0.0
    %310 = vmatprep.subr.mxu0 0.0
    %311 = vmatpush1.msra.mxu0 0.0
    %312 = vmatprep.subr.mxu0 0.0
    %313 = vmatpush1.msra.mxu0 0.0
    %314 = vmatprep.subr.mxu0 0.0
    %315 = vmatpush1.msra.mxu0 0.0
    %316 = vmatprep.subr.mxu0 0.0
    %317 = vmatpush1.msra.mxu0 0.0
    %318 = vmatprep.subr.mxu0 0.0
    %319 = vmatpush1.msra.mxu0 0.0
    %320 = vmatprep.subr.mxu0 0.0
    %321 = vmatpush1.msra.mxu0 0.0
    %322 = vmatprep.subr.mxu0 0.0
    %323 = vmatpush1.msra.mxu0 0.0
    %324 = vmatprep.subr.mxu0 0.0
    %325 = vmatpush1.msra.mxu0 0.0
    %326 = vmatprep.subr.mxu0 0.0
    %327 = vmatpush1.msra.mxu0 0.0
    %328 = vmatprep.subr.mxu0 0.0
    %329 = vmatpush1.msra.mxu0 0.0
    %330 = vmatprep.subr.mxu0 0.0
    %331 = vmatpush1.msra.mxu0 0.0
    %332 = vmatprep.subr.mxu0 0.0
    %333 = vmatpush1.msra.mxu0 0.0
    %334 = vmatprep.subr.mxu0 0.0
    %335 = vmatpush1.msra.mxu0 0.0
    %336 = vmatprep.subr.mxu0 0.0
    %337 = vmatpush1.msra.mxu0 0.0
    %338 = vmatprep.subr.mxu0 0.0
    %339 = vmatpush1.msra.mxu0 0.0
    %340 = vmatprep.subr.mxu0 0.0
    %341 = vmatpush1.msra.mxu0 0.0
    %342 = vmatprep.subr.mxu0 0.0
    %343 = vmatpush1.msra.mxu0 0.0
    %344 = vmatprep.subr.mxu0 0.0
    %345 = vmatpush1.msra.mxu0 0.0
    %346 = vmatprep.subr.mxu0 0.0
    %347 = vmatpush1.msra.mxu0 0.0
    %348 = vmatprep.subr.mxu0 0.0
    %349 = vmatpush1.msra.mxu0 0.0
    %350 = vmatprep.subr.mxu0 0.0
    %351 = vmatpush1.msra.mxu0 0.0
    %352 = vmatprep.subr.mxu0 0.0
    %353 = vmatpush1.msra.mxu0 0.0
    %354 = vmatprep.subr.mxu0 0.0
    %355 = vmatpush1.msra.mxu0 0.0
    %356 = vmatprep.subr.mxu0 0.0
    %357 = vmatpush1.msra.mxu0 0.0
    %358 = vmatprep.subr.mxu0 0.0
    %359 = vmatpush1.msra.mxu0 0.0
    %360 = vmatprep.subr.mxu0 0.0
    %361 = vmatpush1.msra.mxu0 0.0
    %362 = vmatprep.subr.mxu0 0.0
    %363 = vmatpush1.msra.mxu0 0.0
    %364 = vmatprep.mubr.f32.mxu0 0.0
    %365 = vmatmul.mubr.f32.gmra.mrb[0].mxu0 %v298
    %v366 = vpop.f32.mrb[0].mxu0
    %v367 = vadd.f32 %v295, %v366
    %v368 = vpop.f32.mrb[0].mxu0
    %369 = vdwg.mxu0
    %370 = vst [vmem:[#allocation2] sm:$0xff] %v367
    // Predicated region
    $region26: #{tpu_custom_call.1} parent=1 // pred_check
      _
    $region27: #{tpu_custom_call.1} parent=1 // pred_check_branch
      %372 = sbr.rel (0) target = $region29
    $region28: #{tpu_custom_call.1} parent=1 // pred_region
      %s374 = ssub.s32 128, 128
      %375 = vsyncadd [#allocation3], %s374
      %s377 = sshll.u32 [#allocation2], 4
      %s378 = int_to_ptr.vmem [resolvable:$true] %s377
      %380 = dma.vmem_to_hbm [thread:$0]  %s378, 128, %s6, [#allocation3]
    $region29: #{tpu_custom_call.1} parent=1 // pred_fallthru
      _
    // Predicated region
    $region30: #{tpu_custom_call.1} parent=1 // pred_check
      _
    $region31: #{tpu_custom_call.1} parent=1 // pred_check_branch
      %382 = sbr.rel (0) target = $region33
    $region32: #{tpu_custom_call.1} parent=1 // pred_region
      %383 = dma.done [#allocation3], 128
    $region33: #{tpu_custom_call.1} parent=1 // pred_fallthru
      _
    %384 = vsyncpa [#allocation3], 1

</llo_original>
